<compile_context>
chip_gen: v5e
topology: v5e:2x2
jax: 0.10.0
libtpu: 0.0.40
codegen_flags: <defaults>
</compile_context>

<pallas_src>
import functools

import jax
import jax.numpy as jnp
import numpy as np
from jax.experimental import pallas as pl
from jax.experimental.pallas import tpu as pltpu

# Flip to jnp.bfloat16 for larger n_feats (matmul operands only; bias/LReLU/
# combine stay f32 via preferred_element_type + f32 scratch).
MXU_DTYPE = jnp.float32


# --------------------------------------------------------------------------
# Fused Pallas kernel
# --------------------------------------------------------------------------
def _ft_fused_kernel(x_ref, mask_ref, w1_ref, w2_ref, o_ref,
                     xbuf_ref, hbuf_ref, *, H, W, C, Nb, fuse_second):
    """One grid step processes Nb images.

    x_ref   : (Nb, C, HW)    dense lane-packed input images (HW = H*W)
    mask_ref: (2, HW) f32    row 0: zero where x==0 (for dx=-1 taps)
                             row 1: zero where x==W-1 (for dx=+1 taps)
    w1_ref  : (2C, 9C+1)     packed conv1 weights of BOTH branches, bias folded
    w2_ref  : fused   -> (2C, 18C+1) block-diagonal conv2 weights, bias folded
              unfused -> (2, C, 9C+1) per-branch conv2 weights, bias folded
    o_ref   : (Nb, C, HW)    dense lane-packed output
    xbuf_ref: (Nb, C,  NBUF) VMEM scratch, zero-haloed flat input
    hbuf_ref: (Nb, 2C, NBUF) VMEM scratch, zero-haloed flat LeakyReLU output
    """
    HW = H * W
    HALO = W + 1                  # covers the worst tap shift |dy*W + dx|
    f32 = jnp.float32

    m_left = mask_ref[0:1, :]     # (1, HW)
    m_right = mask_ref[1:2, :]    # (1, HW)
    ones = jnp.ones((1, HW), f32)

    def taps_of(buf):
        """buf: (Cb, NBUF) zero-haloed flat image -> list of 9 (Cb, HW) taps."""
        cols = []
        for dy in (-1, 0, 1):
            for dx in (-1, 0, 1):
                s = HALO + dy * W + dx
                t = buf[:, s:s + HW]          # contiguous lane slice
                if dx == -1:
                    t = t * m_left            # kill horizontal wrap at x==0
                elif dx == 1:
                    t = t * m_right           # kill horizontal wrap at x==W-1
                cols.append(t)
        return cols

    # ---- embed each image into its zero-haloed flat buffer ----------------
    for nb in range(Nb):
        xbuf_ref[nb, :, :HALO] = jnp.zeros((C, HALO), f32)
        xbuf_ref[nb, :, HALO + HW:] = jnp.zeros((C, HALO), f32)
        xbuf_ref[nb, :, HALO:HALO + HW] = x_ref[nb].astype(f32)

    # ---- first 3x3 conv of BOTH branches: one matmul + LeakyReLU ----------
    p1 = []
    for nb in range(Nb):
        xb = xbuf_ref[nb]                                        # (C, NBUF)
        p1.append(jnp.concatenate(taps_of(xb) + [ones], axis=0))  # (9C+1, HW)
    p1 = jnp.concatenate(p1, axis=1)                             # (9C+1, Nb*HW)

    h = jnp.dot(w1_ref[...], p1.astype(w1_ref.dtype),
                preferred_element_type=jnp.float32)              # (2C, Nb*HW)
    h = jnp.where(h > 0, h, 0.2 * h)                             # LeakyReLU(0.2)

    # ---- re-embed h into zero-haloed buffers ------------------------------
    for nb in range(Nb):
        hbuf_ref[nb, :, :HALO] = jnp.zeros((2 * C, HALO), f32)
        hbuf_ref[nb, :, HALO + HW:] = jnp.zeros((2 * C, HALO), f32)
        hbuf_ref[nb, :, HALO:HALO + HW] = h[:, nb * HW:(nb + 1) * HW]

    # ---- second 3x3 conv of each branch ------------------------------------
    if fuse_second:
        # Single block-diagonal matmul over both branches (9C < 128 regime).
        p2 = []
        for nb in range(Nb):
            hb = hbuf_ref[nb]                                    # (2C, NBUF)
            p2.append(jnp.concatenate(
                taps_of(hb[:C]) + taps_of(hb[C:]) + [ones], axis=0))
        p2 = jnp.concatenate(p2, axis=1)                         # (18C+1, Nb*HW)
        ss = jnp.dot(w2_ref[...], p2.astype(w2_ref.dtype),
                     preferred_element_type=jnp.float32)         # (2C, Nb*HW)
        scale, shift = ss[:C], ss[C:]
    else:
        p2s, p2h = [], []
        for nb in range(Nb):
            hb = hbuf_ref[nb]
            p2s.append(jnp.concatenate(taps_of(hb[:C]) + [ones], axis=0))
            p2h.append(jnp.concatenate(taps_of(hb[C:]) + [ones], axis=0))
        p2s = jnp.concatenate(p2s, axis=1)                       # (9C+1, Nb*HW)
        p2h = jnp.concatenate(p2h, axis=1)
        scale = jnp.dot(w2_ref[0], p2s.astype(w2_ref.dtype),
                        preferred_element_type=jnp.float32)      # (C, Nb*HW)
        shift = jnp.dot(w2_ref[1], p2h.astype(w2_ref.dtype),
                        preferred_element_type=jnp.float32)

    # ---- out = x * (scale + 1) + shift, already lane-dense ------------------
    for nb in range(Nb):
        xd = x_ref[nb].astype(jnp.float32)                       # (C, HW)
        o = xd * (scale[:, nb * HW:(nb + 1) * HW] + 1.0) \
            + shift[:, nb * HW:(nb + 1) * HW]
        o_ref[nb] = o.astype(o_ref.dtype)


# --------------------------------------------------------------------------
# Wrapper
# --------------------------------------------------------------------------
def _pack_conv_weight(w_oihw):
    """(Cout, Cin, 3, 3) -> (Cout, 9*Cin), tap-major / cin-minor columns."""
    cout, cin = w_oihw.shape[0], w_oihw.shape[1]
    return jnp.transpose(w_oihw, (0, 2, 3, 1)).reshape(cout, 9 * cin)


@functools.partial(jax.jit, static_argnames=("images_per_block",
                                             "fuse_second_convs"))
def self_ft_layer(x_nchw, params, images_per_block=None, fuse_second_convs=None):
    """x_nchw: (N, C, H, W).  params: (scale_convs, shift_convs), each
    ((w1_oihw, b1), (w2_oihw, b2))."""
    scale_convs, shift_convs = params
    (ws1, bs1), (ws2, bs2) = scale_convs
    (wh1, bh1), (wh2, bh2) = shift_convs

    N, C, H, W = x_nchw.shape
    HW = H * W
    HALO = W + 1
    NBUF = HW + 2 * HALO

    if images_per_block is None:
        # Amortize per-grid-step overhead while keeping >= 2 'parallel' grid
        # steps when possible (v7x has 2 TensorCores per chip).
        images_per_block = 2 if (N % 2 == 0 and N >= 4) else 1
    Nb = images_per_block
    assert N % Nb == 0, "images_per_block must divide the batch"

    if fuse_second_convs is None:
        fuse_second_convs = (9 * C) < 128

    # ---- pack weights (bias folded as an extra column, MXU dtype) ----------
    w1 = jnp.concatenate([_pack_conv_weight(ws1), _pack_conv_weight(wh1)], 0)
    b1 = jnp.concatenate([bs1, bh1]).reshape(2 * C, 1)
    w1 = jnp.concatenate([w1, b1], axis=1).astype(MXU_DTYPE)      # (2C, 9C+1)

    p2s = _pack_conv_weight(ws2)
    p2h = _pack_conv_weight(wh2)
    if fuse_second_convs:
        z = jnp.zeros((C, 9 * C), p2s.dtype)
        w2 = jnp.concatenate([
            jnp.concatenate([p2s, z, bs2.reshape(C, 1)], axis=1),
            jnp.concatenate([z, p2h, bh2.reshape(C, 1)], axis=1)],
            axis=0).astype(MXU_DTYPE)                             # (2C, 18C+1)
        w2_spec = pl.BlockSpec((2 * C, 18 * C + 1), lambda n: (0, 0))
    else:
        w2 = jnp.stack([
            jnp.concatenate([p2s, bs2.reshape(C, 1)], axis=1),
            jnp.concatenate([p2h, bh2.reshape(C, 1)], axis=1)],
            axis=0).astype(MXU_DTYPE)                             # (2, C, 9C+1)
        w2_spec = pl.BlockSpec((2, C, 9 * C + 1), lambda n: (0, 0, 0))

    # Grid-invariant horizontal-boundary masks, hoisted out of the kernel;
    # constant index_map keeps them VMEM-resident across grid steps.
    cols = jnp.arange(HW, dtype=jnp.int32) % W
    mask = jnp.stack([(cols != 0), (cols != W - 1)]).astype(jnp.float32)

    # Pure bitcast reshape (contiguous) -> no extra HBM round trip.
    xf = x_nchw.reshape(N, C, HW)

    kernel = functools.partial(_ft_fused_kernel, H=H, W=W, C=C, Nb=Nb,
                               fuse_second=fuse_second_convs)

    out = pl.pallas_call(
        kernel,
        out_shape=jax.ShapeDtypeStruct((N, C, HW), x_nchw.dtype),
        grid_spec=pltpu.PrefetchScalarGridSpec(
            num_scalar_prefetch=0,
            grid=(N // Nb,),
            in_specs=[
                pl.BlockSpec((Nb, C, HW), lambda n: (n, 0, 0)),   # x
                pl.BlockSpec((2, HW), lambda n: (0, 0)),          # masks
                pl.BlockSpec((2 * C, 9 * C + 1), lambda n: (0, 0)),  # w1+b1
                w2_spec,                                          # w2+b2
            ],
            out_specs=pl.BlockSpec((Nb, C, HW), lambda n: (n, 0, 0)),
            scratch_shapes=[
                pltpu.VMEM((Nb, C, NBUF), jnp.float32),           # haloed x
                pltpu.VMEM((Nb, 2 * C, NBUF), jnp.float32),       # haloed h
            ],
        ),
        compiler_params=pltpu.CompilerParams(
            dimension_semantics=("parallel",),
        ),
    )(xf, mask, w1, w2)

    # Bitcast reshape back to NCHW.
    return out.reshape(N, C, H, W)


# --------------------------------------------------------------------------
# Deterministic parameter init (mimics torch Conv2d default uniform init)
# --------------------------------------------------------------------------
def init_conv_params(key, n_feats):
    kw, kb = jax.random.split(key)
    fan_in = n_feats * 3 * 3
    bound = 1.0 / np.sqrt(fan_in)
    w_oihw = jax.random.uniform(kw, (n_feats, n_feats, 3, 3), jnp.float32,
                                -bound, bound)
    b = jax.random.uniform(kb, (n_feats,), jnp.float32, -bound, bound)
    return w_oihw, b


def reference_forward(x_nchw, scale_convs, shift_convs):
    """Pure-JAX NCHW reference mirroring the PyTorch module."""
    def conv(x, w, b):
        y = jax.lax.conv_general_dilated(
            x, w, window_strides=(1, 1), padding=((1, 1), (1, 1)),
            dimension_numbers=("NCHW", "OIHW", "NCHW"))
        return y + b[None, :, None, None]

    def branch(x, p):
        (w1, b1), (w2, b2) = p
        h = conv(x, w1, b1)
        h = jnp.where(h > 0, h, 0.2 * h)
        return conv(h, w2, b2)

    shift = branch(x_nchw, shift_convs)
    scale = branch(x_nchw, scale_convs)
    return x_nchw * (scale + 1.0) + shift


# --------------------------------------------------------------------------
if __name__ == "__main__":
    N, C, H, W = 2, 8, 16, 16  # n_feats = 8

    key = jax.random.PRNGKey(0)
    kx, k1, k2, k3, k4 = jax.random.split(key, 5)

    x = jax.random.normal(kx, (N, C, H, W), jnp.float32)
    scale_convs = (init_conv_params(k1, C), init_conv_params(k2, C))
    shift_convs = (init_conv_params(k3, C), init_conv_params(k4, C))
    params = (scale_convs, shift_convs)

    ref = jax.block_until_ready(reference_forward(x, scale_convs, shift_convs))

    # Default: one image per grid step (>= 2 parallel steps -> both v7x TCs),
    # fused block-diagonal second conv (9C < 128).
    out = jax.block_until_ready(self_ft_layer(x, params))
    np.testing.assert_allclose(np.asarray(out), np.asarray(ref),
                               rtol=1e-2, atol=1e-2)

    # Lane-batched path: both images in one grid step (amortizes per-step cost).
    out2 = jax.block_until_ready(self_ft_layer(x, params, images_per_block=2))
    np.testing.assert_allclose(np.asarray(out2), np.asarray(ref),
                               rtol=1e-2, atol=1e-2)

    # Separate second-conv matmuls (the path used once 9C >= 128).
    out3 = jax.block_until_ready(self_ft_layer(x, params,
                                               fuse_second_convs=False))
    np.testing.assert_allclose(np.asarray(out3), np.asarray(ref),
                               rtol=1e-2, atol=1e-2)

    print("KERNEL_OK")
</pallas_src>

<mosaic_0001>
module attributes {stable_mosaic.version = 11 : i64} {
  func.func @_ft_fused_kernel(%arg0: i32, %arg1: memref<1x8x256xf32, #tpu.memory_space<vmem>>, %arg2: memref<2x256xf32, #tpu.memory_space<vmem>>, %arg3: memref<16x73xf32, #tpu.memory_space<vmem>>, %arg4: memref<16x145xf32, #tpu.memory_space<vmem>>, %arg5: memref<1x8x256xf32, #tpu.memory_space<vmem>>, %arg6: memref<1x8x290xf32, #tpu.memory_space<vmem>>, %arg7: memref<1x16x290xf32, #tpu.memory_space<vmem>>) attributes {dimension_semantics = [#tpu.dimension_semantics<parallel>], iteration_bounds = array<i64: 2>, scalar_prefetch = 0 : i64, scratch_operands = 2 : i64, tpu.core_type = #tpu.core_type<tc>, window_params = [{transform_indices = @transform_0, window_bounds = array<i64: 1, 8, 256>}, {pipeline_mode = #tpu.pipeline_mode<synchronous>, transform_indices = @transform_1, window_bounds = array<i64: 2, 256>}, {pipeline_mode = #tpu.pipeline_mode<synchronous>, transform_indices = @transform_2, window_bounds = array<i64: 16, 73>}, {pipeline_mode = #tpu.pipeline_mode<synchronous>, transform_indices = @transform_3, window_bounds = array<i64: 16, 145>}, {transform_indices = @transform_4, window_bounds = array<i64: 1, 8, 256>}]} {
    %c0 = arith.constant 0 : index
    %c0_0 = arith.constant 0 : index
    %0 = vector.load %arg2[%c0, %c0_0] : memref<2x256xf32, #tpu.memory_space<vmem>>, vector<1x256xf32>
    %c1 = arith.constant 1 : index
    %c0_1 = arith.constant 0 : index
    %1 = vector.load %arg2[%c1, %c0_1] : memref<2x256xf32, #tpu.memory_space<vmem>>, vector<1x256xf32>
    %cst = arith.constant 1.000000e+00 : f32
    %2 = vector.broadcast %cst : f32 to vector<1x256xf32>
    %cst_2 = arith.constant 0.000000e+00 : f32
    %3 = vector.broadcast %cst_2 : f32 to vector<8x17xf32>
    %c0_3 = arith.constant 0 : index
    %c0_4 = arith.constant 0 : index
    %c0_5 = arith.constant 0 : index
    %4 = vector.load %arg6[%c0_3, %c0_4, %c0_5] : memref<1x8x290xf32, #tpu.memory_space<vmem>>, vector<1x8x17xf32>
    %5 = vector.shape_cast %4 : vector<1x8x17xf32> to vector<8x17xf32>
    %6 = vector.shape_cast %3 : vector<8x17xf32> to vector<1x8x17xf32>
    tpu.vector_store %arg6[%c0_3, %c0_4, %c0_5], %6 {strides = array<i32>} : memref<1x8x290xf32, #tpu.memory_space<vmem>>, vector<1x8x17xf32>,
    %cst_6 = arith.constant 0.000000e+00 : f32
    %7 = vector.broadcast %cst_6 : f32 to vector<8x17xf32>
    %c0_7 = arith.constant 0 : index
    %c0_8 = arith.constant 0 : index
    %c273 = arith.constant 273 : index
    %8 = vector.load %arg6[%c0_7, %c0_8, %c273] : memref<1x8x290xf32, #tpu.memory_space<vmem>>, vector<1x8x17xf32>
    %9 = vector.shape_cast %8 : vector<1x8x17xf32> to vector<8x17xf32>
    %10 = vector.shape_cast %7 : vector<8x17xf32> to vector<1x8x17xf32>
    tpu.vector_store %arg6[%c0_7, %c0_8, %c273], %10 {strides = array<i32>} : memref<1x8x290xf32, #tpu.memory_space<vmem>>, vector<1x8x17xf32>,
    %c0_9 = arith.constant 0 : index
    %c0_10 = arith.constant 0 : index
    %c0_11 = arith.constant 0 : index
    %11 = vector.load %arg1[%c0_9, %c0_10, %c0_11] : memref<1x8x256xf32, #tpu.memory_space<vmem>>, vector<1x8x256xf32>
    %12 = vector.shape_cast %11 : vector<1x8x256xf32> to vector<8x256xf32>
    %c0_12 = arith.constant 0 : index
    %c0_13 = arith.constant 0 : index
    %c17 = arith.constant 17 : index
    %13 = vector.load %arg6[%c0_12, %c0_13, %c17] : memref<1x8x290xf32, #tpu.memory_space<vmem>>, vector<1x8x256xf32>
    %14 = vector.shape_cast %13 : vector<1x8x256xf32> to vector<8x256xf32>
    %15 = vector.shape_cast %12 : vector<8x256xf32> to vector<1x8x256xf32>
    tpu.vector_store %arg6[%c0_12, %c0_13, %c17], %15 {strides = array<i32>} : memref<1x8x290xf32, #tpu.memory_space<vmem>>, vector<1x8x256xf32>,
    %c0_14 = arith.constant 0 : index
    %c0_15 = arith.constant 0 : index
    %c0_16 = arith.constant 0 : index
    %16 = vector.load %arg6[%c0_14, %c0_15, %c0_16] : memref<1x8x290xf32, #tpu.memory_space<vmem>>, vector<1x8x290xf32>
    %17 = vector.shape_cast %16 : vector<1x8x290xf32> to vector<8x290xf32>
    %18 = vector.extract_strided_slice %17 {offsets = [0, 0], sizes = [8, 256], strides = [1, 1]} : vector<8x290xf32> to vector<8x256xf32>
    %19 = vector.broadcast %0 : vector<1x256xf32> to vector<8x256xf32>
    %20 = arith.mulf %18, %19 : vector<8x256xf32>
    %21 = vector.extract_strided_slice %17 {offsets = [0, 1], sizes = [8, 256], strides = [1, 1]} : vector<8x290xf32> to vector<8x256xf32>
    %22 = vector.extract_strided_slice %17 {offsets = [0, 2], sizes = [8, 256], strides = [1, 1]} : vector<8x290xf32> to vector<8x256xf32>
    %23 = vector.broadcast %1 : vector<1x256xf32> to vector<8x256xf32>
    %24 = arith.mulf %22, %23 : vector<8x256xf32>
    %25 = vector.extract_strided_slice %17 {offsets = [0, 16], sizes = [8, 256], strides = [1, 1]} : vector<8x290xf32> to vector<8x256xf32>
    %26 = vector.broadcast %0 : vector<1x256xf32> to vector<8x256xf32>
    %27 = arith.mulf %25, %26 : vector<8x256xf32>
    %28 = vector.extract_strided_slice %17 {offsets = [0, 17], sizes = [8, 256], strides = [1, 1]} : vector<8x290xf32> to vector<8x256xf32>
    %29 = vector.extract_strided_slice %17 {offsets = [0, 18], sizes = [8, 256], strides = [1, 1]} : vector<8x290xf32> to vector<8x256xf32>
    %30 = vector.broadcast %1 : vector<1x256xf32> to vector<8x256xf32>
    %31 = arith.mulf %29, %30 : vector<8x256xf32>
    %32 = vector.extract_strided_slice %17 {offsets = [0, 32], sizes = [8, 256], strides = [1, 1]} : vector<8x290xf32> to vector<8x256xf32>
    %33 = vector.broadcast %0 : vector<1x256xf32> to vector<8x256xf32>
    %34 = arith.mulf %32, %33 : vector<8x256xf32>
    %35 = vector.extract_strided_slice %17 {offsets = [0, 33], sizes = [8, 256], strides = [1, 1]} : vector<8x290xf32> to vector<8x256xf32>
    %36 = vector.extract_strided_slice %17 {offsets = [0, 34], sizes = [8, 256], strides = [1, 1]} : vector<8x290xf32> to vector<8x256xf32>
    %37 = vector.broadcast %1 : vector<1x256xf32> to vector<8x256xf32>
    %38 = arith.mulf %36, %37 : vector<8x256xf32>
    %39 = tpu.concatenate %20, %21, %24, %27, %28, %31, %34, %35, %38, %2 in 0 : vector<8x256xf32>, vector<8x256xf32>, vector<8x256xf32>, vector<8x256xf32>, vector<8x256xf32>, vector<8x256xf32>, vector<8x256xf32>, vector<8x256xf32>, vector<8x256xf32>, vector<1x256xf32> -> vector<73x256xf32>
    %c0_17 = arith.constant 0 : index
    %c0_18 = arith.constant 0 : index
    %40 = vector.load %arg3[%c0_17, %c0_18] : memref<16x73xf32, #tpu.memory_space<vmem>>, vector<16x73xf32>
    %cst_19 = arith.constant dense<0.000000e+00> : vector<16x256xf32>
    %41 = tpu.matmul %40, %39, %cst_19 {dimension_numbers = #tpu.dot_dimension_numbers<[1], [0], [0], [1], [0, 0, 1, 1], [], []>} : vector<16x73xf32>, vector<73x256xf32>, vector<16x256xf32> -> vector<16x256xf32>
    %cst_20 = arith.constant 0.000000e+00 : f32
    %42 = vector.broadcast %cst_20 : f32 to vector<16x256xf32>
    %43 = arith.cmpf ogt, %41, %42 : vector<16x256xf32>
    %cst_21 = arith.constant 2.000000e-01 : f32
    %44 = vector.broadcast %cst_21 : f32 to vector<16x256xf32>
    %45 = arith.mulf %44, %41 : vector<16x256xf32>
    %46 = arith.select %43, %41, %45 : vector<16x256xi1>, vector<16x256xf32>
    %cst_22 = arith.constant 0.000000e+00 : f32
    %47 = vector.broadcast %cst_22 : f32 to vector<16x17xf32>
    %c0_23 = arith.constant 0 : index
    %c0_24 = arith.constant 0 : index
    %c0_25 = arith.constant 0 : index
    %48 = vector.load %arg7[%c0_23, %c0_24, %c0_25] : memref<1x16x290xf32, #tpu.memory_space<vmem>>, vector<1x16x17xf32>
    %49 = vector.shape_cast %48 : vector<1x16x17xf32> to vector<16x17xf32>
    %50 = vector.shape_cast %47 : vector<16x17xf32> to vector<1x16x17xf32>
    tpu.vector_store %arg7[%c0_23, %c0_24, %c0_25], %50 {strides = array<i32>} : memref<1x16x290xf32, #tpu.memory_space<vmem>>, vector<1x16x17xf32>,
    %cst_26 = arith.constant 0.000000e+00 : f32
    %51 = vector.broadcast %cst_26 : f32 to vector<16x17xf32>
    %c0_27 = arith.constant 0 : index
    %c0_28 = arith.constant 0 : index
    %c273_29 = arith.constant 273 : index
    %52 = vector.load %arg7[%c0_27, %c0_28, %c273_29] : memref<1x16x290xf32, #tpu.memory_space<vmem>>, vector<1x16x17xf32>
    %53 = vector.shape_cast %52 : vector<1x16x17xf32> to vector<16x17xf32>
    %54 = vector.shape_cast %51 : vector<16x17xf32> to vector<1x16x17xf32>
    tpu.vector_store %arg7[%c0_27, %c0_28, %c273_29], %54 {strides = array<i32>} : memref<1x16x290xf32, #tpu.memory_space<vmem>>, vector<1x16x17xf32>,
    %c0_30 = arith.constant 0 : index
    %c0_31 = arith.constant 0 : index
    %c17_32 = arith.constant 17 : index
    %55 = vector.load %arg7[%c0_30, %c0_31, %c17_32] : memref<1x16x290xf32, #tpu.memory_space<vmem>>, vector<1x16x256xf32>
    %56 = vector.shape_cast %55 : vector<1x16x256xf32> to vector<16x256xf32>
    %57 = vector.shape_cast %46 : vector<16x256xf32> to vector<1x16x256xf32>
    tpu.vector_store %arg7[%c0_30, %c0_31, %c17_32], %57 {strides = array<i32>} : memref<1x16x290xf32, #tpu.memory_space<vmem>>, vector<1x16x256xf32>,
    %c0_33 = arith.constant 0 : index
    %c0_34 = arith.constant 0 : index
    %c0_35 = arith.constant 0 : index
    %58 = vector.load %arg7[%c0_33, %c0_34, %c0_35] : memref<1x16x290xf32, #tpu.memory_space<vmem>>, vector<1x16x290xf32>
    %59 = vector.shape_cast %58 : vector<1x16x290xf32> to vector<16x290xf32>
    %60 = vector.extract_strided_slice %59 {offsets = [0, 0], sizes = [8, 290], strides = [1, 1]} : vector<16x290xf32> to vector<8x290xf32>
    %61 = vector.extract_strided_slice %60 {offsets = [0, 0], sizes = [8, 256], strides = [1, 1]} : vector<8x290xf32> to vector<8x256xf32>
    %62 = vector.broadcast %0 : vector<1x256xf32> to vector<8x256xf32>
    %63 = arith.mulf %61, %62 : vector<8x256xf32>
    %64 = vector.extract_strided_slice %60 {offsets = [0, 1], sizes = [8, 256], strides = [1, 1]} : vector<8x290xf32> to vector<8x256xf32>
    %65 = vector.extract_strided_slice %60 {offsets = [0, 2], sizes = [8, 256], strides = [1, 1]} : vector<8x290xf32> to vector<8x256xf32>
    %66 = vector.broadcast %1 : vector<1x256xf32> to vector<8x256xf32>
    %67 = arith.mulf %65, %66 : vector<8x256xf32>
    %68 = vector.extract_strided_slice %60 {offsets = [0, 16], sizes = [8, 256], strides = [1, 1]} : vector<8x290xf32> to vector<8x256xf32>
    %69 = vector.broadcast %0 : vector<1x256xf32> to vector<8x256xf32>
    %70 = arith.mulf %68, %69 : vector<8x256xf32>
    %71 = vector.extract_strided_slice %60 {offsets = [0, 17], sizes = [8, 256], strides = [1, 1]} : vector<8x290xf32> to vector<8x256xf32>
    %72 = vector.extract_strided_slice %60 {offsets = [0, 18], sizes = [8, 256], strides = [1, 1]} : vector<8x290xf32> to vector<8x256xf32>
    %73 = vector.broadcast %1 : vector<1x256xf32> to vector<8x256xf32>
    %74 = arith.mulf %72, %73 : vector<8x256xf32>
    %75 = vector.extract_strided_slice %60 {offsets = [0, 32], sizes = [8, 256], strides = [1, 1]} : vector<8x290xf32> to vector<8x256xf32>
    %76 = vector.broadcast %0 : vector<1x256xf32> to vector<8x256xf32>
    %77 = arith.mulf %75, %76 : vector<8x256xf32>
    %78 = vector.extract_strided_slice %60 {offsets = [0, 33], sizes = [8, 256], strides = [1, 1]} : vector<8x290xf32> to vector<8x256xf32>
    %79 = vector.extract_strided_slice %60 {offsets = [0, 34], sizes = [8, 256], strides = [1, 1]} : vector<8x290xf32> to vector<8x256xf32>
    %80 = vector.broadcast %1 : vector<1x256xf32> to vector<8x256xf32>
    %81 = arith.mulf %79, %80 : vector<8x256xf32>
    %82 = vector.extract_strided_slice %59 {offsets = [8, 0], sizes = [8, 290], strides = [1, 1]} : vector<16x290xf32> to vector<8x290xf32>
    %83 = vector.extract_strided_slice %82 {offsets = [0, 0], sizes = [8, 256], strides = [1, 1]} : vector<8x290xf32> to vector<8x256xf32>
    %84 = vector.broadcast %0 : vector<1x256xf32> to vector<8x256xf32>
    %85 = arith.mulf %83, %84 : vector<8x256xf32>
    %86 = vector.extract_strided_slice %82 {offsets = [0, 1], sizes = [8, 256], strides = [1, 1]} : vector<8x290xf32> to vector<8x256xf32>
    %87 = vector.extract_strided_slice %82 {offsets = [0, 2], sizes = [8, 256], strides = [1, 1]} : vector<8x290xf32> to vector<8x256xf32>
    %88 = vector.broadcast %1 : vector<1x256xf32> to vector<8x256xf32>
    %89 = arith.mulf %87, %88 : vector<8x256xf32>
    %90 = vector.extract_strided_slice %82 {offsets = [0, 16], sizes = [8, 256], strides = [1, 1]} : vector<8x290xf32> to vector<8x256xf32>
    %91 = vector.broadcast %0 : vector<1x256xf32> to vector<8x256xf32>
    %92 = arith.mulf %90, %91 : vector<8x256xf32>
    %93 = vector.extract_strided_slice %82 {offsets = [0, 17], sizes = [8, 256], strides = [1, 1]} : vector<8x290xf32> to vector<8x256xf32>
    %94 = vector.extract_strided_slice %82 {offsets = [0, 18], sizes = [8, 256], strides = [1, 1]} : vector<8x290xf32> to vector<8x256xf32>
    %95 = vector.broadcast %1 : vector<1x256xf32> to vector<8x256xf32>
    %96 = arith.mulf %94, %95 : vector<8x256xf32>
    %97 = vector.extract_strided_slice %82 {offsets = [0, 32], sizes = [8, 256], strides = [1, 1]} : vector<8x290xf32> to vector<8x256xf32>
    %98 = vector.broadcast %0 : vector<1x256xf32> to vector<8x256xf32>
    %99 = arith.mulf %97, %98 : vector<8x256xf32>
    %100 = vector.extract_strided_slice %82 {offsets = [0, 33], sizes = [8, 256], strides = [1, 1]} : vector<8x290xf32> to vector<8x256xf32>
    %101 = vector.extract_strided_slice %82 {offsets = [0, 34], sizes = [8, 256], strides = [1, 1]} : vector<8x290xf32> to vector<8x256xf32>
    %102 = vector.broadcast %1 : vector<1x256xf32> to vector<8x256xf32>
    %103 = arith.mulf %101, %102 : vector<8x256xf32>
    %104 = tpu.concatenate %63, %64, %67, %70, %71, %74, %77, %78, %81, %85, %86, %89, %92, %93, %96, %99 in 0 : vector<8x256xf32>, vector<8x256xf32>, vector<8x256xf32>, vector<8x256xf32>, vector<8x256xf32>, vector<8x256xf32>, vector<8x256xf32>, vector<8x256xf32>, vector<8x256xf32>, vector<8x256xf32>, vector<8x256xf32>, vector<8x256xf32>, vector<8x256xf32>, vector<8x256xf32>, vector<8x256xf32>, vector<8x256xf32> -> vector<128x256xf32>
    %105 = tpu.concatenate %100, %103, %2 in 0 : vector<8x256xf32>, vector<8x256xf32>, vector<1x256xf32> -> vector<17x256xf32>
    %106 = tpu.concatenate %104, %105 in 0 : vector<128x256xf32>, vector<17x256xf32> -> vector<145x256xf32>
    %c0_36 = arith.constant 0 : index
    %c0_37 = arith.constant 0 : index
    %107 = vector.load %arg4[%c0_36, %c0_37] : memref<16x145xf32, #tpu.memory_space<vmem>>, vector<16x145xf32>
    %cst_38 = arith.constant dense<0.000000e+00> : vector<16x256xf32>
    %108 = tpu.matmul %107, %106, %cst_38 {dimension_numbers = #tpu.dot_dimension_numbers<[1], [0], [0], [1], [0, 0, 1, 1], [], []>} : vector<16x145xf32>, vector<145x256xf32>, vector<16x256xf32> -> vector<16x256xf32>
    %109 = vector.extract_strided_slice %108 {offsets = [0, 0], sizes = [8, 256], strides = [1, 1]} : vector<16x256xf32> to vector<8x256xf32>
    %110 = vector.extract_strided_slice %108 {offsets = [8, 0], sizes = [8, 256], strides = [1, 1]} : vector<16x256xf32> to vector<8x256xf32>
    %c0_39 = arith.constant 0 : index
    %c0_40 = arith.constant 0 : index
    %c0_41 = arith.constant 0 : index
    %111 = vector.load %arg1[%c0_39, %c0_40, %c0_41] : memref<1x8x256xf32, #tpu.memory_space<vmem>>, vector<1x8x256xf32>
    %112 = vector.shape_cast %111 : vector<1x8x256xf32> to vector<8x256xf32>
    %cst_42 = arith.constant 1.000000e+00 : f32
    %113 = vector.broadcast %cst_42 : f32 to vector<8x256xf32>
    %114 = arith.addf %109, %113 : vector<8x256xf32>
    %115 = arith.mulf %112, %114 : vector<8x256xf32>
    %116 = arith.addf %115, %110 : vector<8x256xf32>
    %c0_43 = arith.constant 0 : index
    %c0_44 = arith.constant 0 : index
    %c0_45 = arith.constant 0 : index
    %117 = vector.load %arg5[%c0_43, %c0_44, %c0_45] : memref<1x8x256xf32, #tpu.memory_space<vmem>>, vector<1x8x256xf32>
    %118 = vector.shape_cast %117 : vector<1x8x256xf32> to vector<8x256xf32>
    %119 = vector.shape_cast %116 : vector<8x256xf32> to vector<1x8x256xf32>
    tpu.vector_store %arg5[%c0_43, %c0_44, %c0_45], %119 {strides = array<i32>} : memref<1x8x256xf32, #tpu.memory_space<vmem>>, vector<1x8x256xf32>,
    return
  }
  func.func @transform_0(%arg0: i32) -> (i32, i32, i32) {
    %c0_i32 = arith.constant 0 : i32
    %c0_i32_0 = arith.constant 0 : i32
    %c0_i32_1 = arith.constant 0 : i32
    return %arg0, %c0_i32, %c0_i32_0 : i32, i32, i32
  }
  func.func @transform_1(%arg0: i32) -> (i32, i32) {
    %c0_i32 = arith.constant 0 : i32
    %c0_i32_0 = arith.constant 0 : i32
    %c0_i32_1 = arith.constant 0 : i32
    return %c0_i32, %c0_i32_0 : i32, i32
  }
  func.func @transform_2(%arg0: i32) -> (i32, i32) {
    %c0_i32 = arith.constant 0 : i32
    %c0_i32_0 = arith.constant 0 : i32
    %c0_i32_1 = arith.constant 0 : i32
    return %c0_i32, %c0_i32_0 : i32, i32
  }
  func.func @transform_3(%arg0: i32) -> (i32, i32) {
    %c0_i32 = arith.constant 0 : i32
    %c0_i32_0 = arith.constant 0 : i32
    %c0_i32_1 = arith.constant 0 : i32
    return %c0_i32, %c0_i32_0 : i32, i32
  }
  func.func @transform_4(%arg0: i32) -> (i32, i32, i32) {
    %c0_i32 = arith.constant 0 : i32
    %c0_i32_0 = arith.constant 0 : i32
    %c0_i32_1 = arith.constant 0 : i32
    return %arg0, %c0_i32, %c0_i32_0 : i32, i32, i32
  }
}

</mosaic_0001>

<llo_original>
// kernel: self_ft_layer.1
$region0: #{self_ft_layer.1}
  #allocation0 [shape = 'u32[]', space=smem, size = 0x4, offset = 0x4, fixed_abs, tag = 'smem constant byte address 0x4 - core index']
  #allocation1 [shape = 'u32[72,128]{1,0:T(1,128)}', space=vmem, size = 0x9000, scoped, tag = 'internal scratch']
  #allocation2 [shape = 'f32[1,8,290]{2,1,0:T(8,128)}', space=vmem, size = 0x3000, scoped, tag = 'scratch operand']
  #allocation3 [shape = 'f32[1,16,290]{2,1,0:T(8,128)}', space=vmem, size = 0x6000, scoped, tag = 'scratch operand']
  %s0 = inlined_call_operand.vmem [shape: f32[2,8,256], index: 0, kind: input, shape index: {}]
  %s1 = inlined_call_operand.vmem [shape: f32[2,256], index: 1, kind: input, shape index: {}]
  %s2 = inlined_call_operand.vmem [shape: f32[16,73], index: 2, kind: input, shape index: {}]
  %s3 = inlined_call_operand.vmem [shape: f32[16,145], index: 3, kind: input, shape index: {}]
  %s4 = inlined_call_operand.vmem [shape: f32[2,8,256], index: 4, kind: output, shape index: {}]
  %s5 = sld [smem:[#allocation0]]
  $region49: #{self_ft_layer.1} parent=0
    _
  %s7 = ssub.s32 1, %s5
  %s8 = scalar_select 0, %s7, %s5
  loop: start=0, step=1, limit=4
  $region2: #{self_ft_layer.1} parent=0 // loop_pre_header
    _
  $region3: #{self_ft_layer.1} parent=0 // loop_header
    %s10 = sphi 0, %s14
    %p11 = scmp.ge.s32.totalorder %s10, 4
    %s20 = sphi 0, %s22
    %s23 = sphi 0, %s20
    %s24 = sphi 0, %s23
    %s40 = sphi 0, %s24
    %s44 = sphi 0, %s44
    %s46 = sphi 0, %s44
    %s47 = sphi 0, %s46
    %s61 = sphi 0, %s47
    %s65 = sphi 0, %s65
    %s67 = sphi 0, %s65
    %s68 = sphi 0, %s67
    %s82 = sphi 0, %s68
    %s86 = sphi 0, %s86
    %s88 = sphi 0, %s86
    %s89 = sphi 0, %s88
    %s103 = sphi 0, %s89
    %s109 = sphi 0, %s111
    %s112 = sphi 0, %s109
    %s113 = sphi 0, %s112
    %s129 = sphi 0, %s113
  $region4: #{self_ft_layer.1} parent=0 // loop_header_branch
    %13 = sbr.rel (%p11) target = $region8
  $region5: #{self_ft_layer.1} parent=0 // loop_body
    %s15 = ssub.s32 %s10, 1
    %s16 = ssub.s32 %s10, 2
    %s17 = sadd.s32 %s10, 1
    %s18 = ssub.s32 %s10, %s17
    %p19 = scmp.eq.s32.totalorder %s18, 0
    %s21 = sadd.s32 %s20, 1
    %s22 = scalar_select %p19, %s20, %s21
    %p25 = pneg %p19
    %p26 = scmp.eq.s32.totalorder %s10, 1
    %p27 = por %p25, %p26
    %p28 = scmp.ne.s32.totalorder %s20, %s23
    %p29 = scmp.eq.s32.totalorder %s10, 0
    %p30 = por %p28, %p29
    %p31 = scmp.ne.s32.totalorder %s20, %s23
    %p32 = scmp.eq.s32.totalorder %s15, 1
    %p33 = por %p31, %p32
    %p34 = scmp.ne.s32.totalorder %s23, %s24
    %p35 = scmp.eq.s32.totalorder %s15, 0
    %p36 = por %p34, %p35
    %p37 = scmp.ne.s32.totalorder %s23, %s24
    %p38 = scmp.eq.s32.totalorder %s16, 1
    %p39 = por %p37, %p38
    %p41 = scmp.ne.s32.totalorder %s24, %s40
    %p42 = scmp.eq.s32.totalorder %s16, 0
    %p43 = por %p41, %p42
    %s45 = sadd.s32 %s44, 1
    %p48 = scmp.eq.s32.totalorder %s10, 1
    %p49 = scmp.ne.s32.totalorder %s44, %s46
    %p50 = scmp.eq.s32.totalorder %s10, 0
    %p51 = por %p49, %p50
    %p52 = scmp.ne.s32.totalorder %s44, %s46
    %p53 = scmp.eq.s32.totalorder %s15, 1
    %p54 = por %p52, %p53
    %p55 = scmp.ne.s32.totalorder %s46, %s47
    %p56 = scmp.eq.s32.totalorder %s15, 0
    %p57 = por %p55, %p56
    %p58 = scmp.ne.s32.totalorder %s46, %s47
    %p59 = scmp.eq.s32.totalorder %s16, 1
    %p60 = por %p58, %p59
    %p62 = scmp.ne.s32.totalorder %s47, %s61
    %p63 = scmp.eq.s32.totalorder %s16, 0
    %p64 = por %p62, %p63
    %s66 = sadd.s32 %s65, 1
    %p69 = scmp.eq.s32.totalorder %s10, 1
    %p70 = scmp.ne.s32.totalorder %s65, %s67
    %p71 = scmp.eq.s32.totalorder %s10, 0
    %p72 = por %p70, %p71
    %p73 = scmp.ne.s32.totalorder %s65, %s67
    %p74 = scmp.eq.s32.totalorder %s15, 1
    %p75 = por %p73, %p74
    %p76 = scmp.ne.s32.totalorder %s67, %s68
    %p77 = scmp.eq.s32.totalorder %s15, 0
    %p78 = por %p76, %p77
    %p79 = scmp.ne.s32.totalorder %s67, %s68
    %p80 = scmp.eq.s32.totalorder %s16, 1
    %p81 = por %p79, %p80
    %p83 = scmp.ne.s32.totalorder %s68, %s82
    %p84 = scmp.eq.s32.totalorder %s16, 0
    %p85 = por %p83, %p84
    %s87 = sadd.s32 %s86, 1
    %p90 = scmp.eq.s32.totalorder %s10, 1
    %p91 = scmp.ne.s32.totalorder %s86, %s88
    %p92 = scmp.eq.s32.totalorder %s10, 0
    %p93 = por %p91, %p92
    %p94 = scmp.ne.s32.totalorder %s86, %s88
    %p95 = scmp.eq.s32.totalorder %s15, 1
    %p96 = por %p94, %p95
    %p97 = scmp.ne.s32.totalorder %s88, %s89
    %p98 = scmp.eq.s32.totalorder %s15, 0
    %p99 = por %p97, %p98
    %p100 = scmp.ne.s32.totalorder %s88, %s89
    %p101 = scmp.eq.s32.totalorder %s16, 1
    %p102 = por %p100, %p101
    %p104 = scmp.ne.s32.totalorder %s89, %s103
    %p105 = scmp.eq.s32.totalorder %s16, 0
    %p106 = por %p104, %p105
    %s107 = ssub.s32 %s10, %s17
    %p108 = scmp.eq.s32.totalorder %s107, 0
    %s110 = sadd.s32 %s109, 1
    %s111 = scalar_select %p108, %s109, %s110
    %p114 = pneg %p108
    %p115 = scmp.eq.s32.totalorder %s10, 1
    %p116 = por %p114, %p115
    %p117 = scmp.ne.s32.totalorder %s109, %s112
    %p118 = scmp.eq.s32.totalorder %s10, 0
    %p119 = por %p117, %p118
    %p120 = scmp.ne.s32.totalorder %s109, %s112
    %p121 = scmp.eq.s32.totalorder %s15, 1
    %p122 = por %p120, %p121
    %p123 = scmp.ne.s32.totalorder %s112, %s113
    %p124 = scmp.eq.s32.totalorder %s15, 0
    %p125 = por %p123, %p124
    %p126 = scmp.ne.s32.totalorder %s112, %s113
    %p127 = scmp.eq.s32.totalorder %s16, 1
    %p128 = por %p126, %p127
    %p130 = scmp.ne.s32.totalorder %s113, %s129
    %p131 = scmp.eq.s32.totalorder %s16, 0
    %p132 = por %p130, %p131
    %p133 = scmp.le.s32.totalorder 1, %s10
    %p134 = scmp.lt.s32.totalorder %s10, 3
    %p135 = pnand %p133, %p134
    %p136 = pneg %p135
    // Predicated region
    $region9: #{self_ft_layer.1} parent=5 // pred_check
      _
    $region10: #{self_ft_layer.1} parent=5 // pred_check_branch
      %138 = sbr.rel (%p135) target = $region12
    $region11: #{self_ft_layer.1} parent=5 // pred_region
      %s139 = ssub.s32 %s10, 1
      // Predicated region
      $region13: #{self_ft_layer.1} parent=11 // pred_check
        %p140 = pneg %p57
      $region14: #{self_ft_layer.1} parent=11 // pred_check_branch
        %142 = sbr.rel (%p140) target = $region16
      $region15: #{self_ft_layer.1} parent=11 // pred_region
        _
      $region16: #{self_ft_layer.1} parent=11 // pred_fallthru
        _
      // Predicated region
      $region17: #{self_ft_layer.1} parent=11 // pred_check
        %p143 = pneg %p78
      $region18: #{self_ft_layer.1} parent=11 // pred_check_branch
        %145 = sbr.rel (%p143) target = $region20
      $region19: #{self_ft_layer.1} parent=11 // pred_region
        _
      $region20: #{self_ft_layer.1} parent=11 // pred_fallthru
        _
      // Predicated region
      $region21: #{self_ft_layer.1} parent=11 // pred_check
        %p146 = pneg %p99
      $region22: #{self_ft_layer.1} parent=11 // pred_check_branch
        %148 = sbr.rel (%p146) target = $region24
      $region23: #{self_ft_layer.1} parent=11 // pred_region
        _
      $region24: #{self_ft_layer.1} parent=11 // pred_fallthru
        _
    $region12: #{self_ft_layer.1} parent=5 // pred_fallthru
      _
    %p149 = scmp.lt.s32.totalorder %s10, 2
    // Predicated region
    $region25: #{self_ft_layer.1} parent=5 // pred_check
      %p150 = pneg %p149
    $region26: #{self_ft_layer.1} parent=5 // pred_check_branch
      %152 = sbr.rel (%p150) target = $region28
    $region27: #{self_ft_layer.1} parent=5 // pred_region
      // Predicated region
      $region29: #{self_ft_layer.1} parent=27 // pred_check
        %p153 = pneg %p30
      $region30: #{self_ft_layer.1} parent=27 // pred_check_branch
        %155 = sbr.rel (%p153) target = $region32
      $region31: #{self_ft_layer.1} parent=27 // pred_region
        %p156 = scmp.lt.s32.totalorder %s10, 1
        %s157 = scalar_select %p156, %s10, 1
        %s158 = smul.addr %s157, 2
        %s159 = smul.addr %s158, 8
        %s160 = scalar_lea.vmem %s0, %s159
      $region32: #{self_ft_layer.1} parent=27 // pred_fallthru
        _
    $region28: #{self_ft_layer.1} parent=5 // pred_fallthru
      _
    %p161 = scmp.le.s32.totalorder 1, %s10
    %p162 = scmp.lt.s32.totalorder %s10, 3
    %p163 = pnand %p161, %p162
    %p164 = pneg %p163
    // Predicated region
    $region33: #{self_ft_layer.1} parent=5 // pred_check
      _
    $region34: #{self_ft_layer.1} parent=5 // pred_check_branch
      %166 = sbr.rel (%p163) target = $region36
    $region35: #{self_ft_layer.1} parent=5 // pred_region
      %s167 = ssub.s32 %s10, 1
      %p168 = scmp.lt.s32.totalorder %s15, 1
      %s169 = scalar_select %p168, %s15, 1
      %s170 = smul.addr %s169, 2
      %s171 = smul.addr %s170, 8
      %s172 = scalar_lea.vmem %s0, %s171
      %p173 = pneg %p36
      %p174 = pneg %p33
      %p175 = pneg %p57
      %p176 = pneg %p54
      %p177 = pneg %p78
      %p178 = pneg %p75
      %p179 = pneg %p99
      %p180 = pneg %p96
      %p181 = pneg %p125
      %p182 = pneg %p122
      %p183 = scmp.lt.s32.totalorder %s15, 1
      %s184 = scalar_select %p183, %s15, 1
      %s185 = smul.addr %s184, 2
      %s186 = smul.addr %s185, 8
      %s187 = scalar_lea.vmem %s4, %s186
      %p188 = scmp.lt.s32.totalorder %s15, 1
      %s189 = scalar_select %p188, %s15, 1
      %s190 = smul.addr %s189, 2
      %s191 = smul.addr %s190, 8
      %s192 = scalar_lea.vmem %s0, %s191
      %p193 = scmp.lt.s32.totalorder %s15, 1
      %s194 = scalar_select %p193, %s15, 1
      %s195 = smul.addr %s194, 2
      %s196 = smul.addr %s195, 8
      %s197 = scalar_lea.vmem %s4, %s196
      %v198 = vld [vmem:[%s1] ss:$2 sm:$0x3]
      %s199 = scalar_lea.vmem %s1, 1
      %v200 = vld [vmem:[%s199] ss:$2 sm:$0x3]
      %vm201 = vcmask 138240
      %202 = vst.msk [vmem:[#allocation2] sm:$0xff] %vm201, 0.0
      %vm203 = vcmask 277640
      %204 = vst.msk [vmem:[#allocation2 + $0x10] sm:$0xff] %vm203, 0.0
      %v205 = vld [vmem:[%s192] sm:$0xff]
      %v206 = vld [vmem:[%s192 + $0x8] sm:$0xff]
      %209 = vrot.lane.b32.xlu0 %v205, 17
      %v210 = vpop.permute.xlu0 %209
      %211 = vrot.lane.b32.xlu0 %v206, 17
      %v212 = vpop.permute.xlu0 %211
      %v213 = vsel %vm201, %v210, %v212
      %vm217 = vcmask 1047688
      %218 = vst.msk [vmem:[#allocation2] sm:$0xff] %vm217, %v210
      %219 = vst [vmem:[#allocation2 + $0x8] sm:$0xff] %v213
      %220 = vst.msk [vmem:[#allocation2 + $0x10] sm:$0xff] %vm201, %v212
      %v221 = vld [vmem:[#allocation2] sm:$0xff]
      %v222 = vld [vmem:[#allocation2 + $0x8] sm:$0xff]
      %v223 = vld [vmem:[#allocation2 + $0x10] sm:$0xff]
      %v225 = vperm.slane %v198, 0
      %v226 = vperm.slane %v198, 1
      %v229 = vmul.f32 %v221, %v225
      %v230 = vmul.f32 %v222, %v226
      %v232 = vperm.slane %v200, 0
      %v233 = vperm.slane %v200, 1
      %234 = vrot.lane.b32.xlu0 %v232, 2
      %v235 = vpop.permute.xlu0 %234
      %236 = vrot.lane.b32.xlu0 %v233, 2
      %v237 = vpop.permute.xlu0 %236
      %vm238 = vcmask 15360
      %v239 = vsel %vm238, %v235, %v237
      %v243 = vmul.f32 %v221, %v235
      %v244 = vmul.f32 %v222, %v239
      %v245 = vmul.f32 %v223, %v237
      %246 = vrot.lane.b32.xlu0 %v225, 16
      %v247 = vpop.permute.xlu0 %246
      %248 = vrot.lane.b32.xlu0 %v226, 16
      %v249 = vpop.permute.xlu0 %248
      %vm250 = vcmask 130048
      %v251 = vsel %vm250, %v247, %v249
      %v255 = vmul.f32 %v221, %v247
      %v256 = vmul.f32 %v222, %v251
      %v257 = vmul.f32 %v223, %v249
      %258 = vrot.lane.b32.xlu0 %v232, 18
      %v259 = vpop.permute.xlu0 %258
      %260 = vrot.lane.b32.xlu0 %v233, 18
      %v261 = vpop.permute.xlu0 %260
      %vm262 = vcmask 146432
      %v263 = vsel %vm262, %v259, %v261
      %v267 = vmul.f32 %v221, %v259
      %v268 = vmul.f32 %v222, %v263
      %v269 = vmul.f32 %v223, %v261
      %270 = vrot.lane.b32.xlu0 %v225, 32
      %v271 = vpop.permute.xlu0 %270
      %272 = vrot.lane.b32.xlu0 %v226, 32
      %v273 = vpop.permute.xlu0 %272
      %vm274 = vcmask 261120
      %v275 = vsel %vm274, %v271, %v273
      %v279 = vmul.f32 %v221, %v271
      %v280 = vmul.f32 %v222, %v275
      %v281 = vmul.f32 %v223, %v273
      %282 = vrot.lane.b32.xlu0 %v232, 34
      %v283 = vpop.permute.xlu0 %282
      %284 = vrot.lane.b32.xlu0 %v233, 34
      %v285 = vpop.permute.xlu0 %284
      %vm286 = vcmask 277504
      %v287 = vsel %vm286, %v283, %v285
      %v291 = vmul.f32 %v221, %v283
      %v292 = vmul.f32 %v222, %v287
      %v293 = vmul.f32 %v223, %v285
      %297 = vrot.lane.b32.xlu0 %v221, 127
      %v298 = vpop.permute.xlu0 %297
      %299 = vrot.lane.b32.xlu0 %v222, 127
      %v300 = vpop.permute.xlu0 %299
      %301 = vrot.lane.b32.xlu0 %v223, 127
      %v302 = vpop.permute.xlu0 %301
      %vm303 = vcmask 1039360
      %v304 = vsel %vm303, %v298, %v300
      %v305 = vsel %vm303, %v300, %v302
      %311 = vrot.lane.b32.xlu0 %v243, 126
      %v312 = vpop.permute.xlu0 %311
      %313 = vrot.lane.b32.xlu0 %v244, 126
      %v314 = vpop.permute.xlu0 %313
      %315 = vrot.lane.b32.xlu0 %v245, 126
      %v316 = vpop.permute.xlu0 %315
      %vm317 = vcmask 1031168
      %v318 = vsel %vm317, %v312, %v314
      %v319 = vsel %vm317, %v314, %v316
      %325 = vrot.lane.b32.xlu0 %v255, 112
      %v326 = vpop.permute.xlu0 %325
      %327 = vrot.lane.b32.xlu0 %v256, 112
      %v328 = vpop.permute.xlu0 %327
      %329 = vrot.lane.b32.xlu0 %v257, 112
      %v330 = vpop.permute.xlu0 %329
      %vm331 = vcmask 916480
      %v332 = vsel %vm331, %v326, %v328
      %v333 = vsel %vm331, %v328, %v330
      %336 = vrot.lane.b32.xlu0 %v221, 111
      %v337 = vpop.permute.xlu0 %336
      %338 = vrot.lane.b32.xlu0 %v222, 111
      %v339 = vpop.permute.xlu0 %338
      %340 = vrot.lane.b32.xlu0 %v223, 111
      %v341 = vpop.permute.xlu0 %340
      %vm342 = vcmask 908288
      %v343 = vsel %vm342, %v337, %v339
      %v344 = vsel %vm342, %v339, %v341
      %350 = vrot.lane.b32.xlu0 %v267, 110
      %v351 = vpop.permute.xlu0 %350
      %352 = vrot.lane.b32.xlu0 %v268, 110
      %v353 = vpop.permute.xlu0 %352
      %354 = vrot.lane.b32.xlu0 %v269, 110
      %v355 = vpop.permute.xlu0 %354
      %vm356 = vcmask 900096
      %v357 = vsel %vm356, %v351, %v353
      %v358 = vsel %vm356, %v353, %v355
      %364 = vrot.lane.b32.xlu0 %v279, 96
      %v365 = vpop.permute.xlu0 %364
      %366 = vrot.lane.b32.xlu0 %v280, 96
      %v367 = vpop.permute.xlu0 %366
      %368 = vrot.lane.b32.xlu0 %v281, 96
      %v369 = vpop.permute.xlu0 %368
      %vm370 = vcmask 785408
      %v371 = vsel %vm370, %v365, %v367
      %v372 = vsel %vm370, %v367, %v369
      %375 = vrot.lane.b32.xlu0 %v221, 95
      %v376 = vpop.permute.xlu0 %375
      %377 = vrot.lane.b32.xlu0 %v222, 95
      %v378 = vpop.permute.xlu0 %377
      %379 = vrot.lane.b32.xlu0 %v223, 95
      %v380 = vpop.permute.xlu0 %379
      %vm381 = vcmask 777216
      %v382 = vsel %vm381, %v376, %v378
      %v383 = vsel %vm381, %v378, %v380
      %389 = vrot.lane.b32.xlu0 %v291, 94
      %v390 = vpop.permute.xlu0 %389
      %391 = vrot.lane.b32.xlu0 %v292, 94
      %v392 = vpop.permute.xlu0 %391
      %393 = vrot.lane.b32.xlu0 %v293, 94
      %v394 = vpop.permute.xlu0 %393
      %vm395 = vcmask 769024
      %v396 = vsel %vm395, %v390, %v392
      %v397 = vsel %vm395, %v392, %v394
      %v400 = vld [vmem:[%s2] sm:$0xff]
      %v401 = vld [vmem:[%s2 + $0x8] sm:$0xff]
      %vm402 = vcmask 596992
      %v404 = vsel %vm402, %v400, 0
      %v407 = vsel %vm402, %v401, 0
      %vm409 = vcmask 1040384
      %v411 = vsel %vm409, 1.0, 0
      %413 = vmatpush.msra.mxu0 0.0
      %414 = vmatpush.msra.mxu0 0.0
      %415 = vmatpush.msra.mxu0 0.0
      %416 = vmatpush.msra.mxu0 0.0
      %417 = vmatpush.msra.mxu0 0.0
      %418 = vmatpush.msra.mxu0 0.0
      %419 = vmatpush.msra.mxu0 %v411
      %420 = vmatpush.msra.mxu0 %v396
      %421 = vmatpush.msra.mxu0 %v382
      %422 = vmatpush.msra.mxu0 %v371
      %423 = vmatpush.msra.mxu0 %v357
      %424 = vmatpush.msra.mxu0 %v343
      %425 = vmatpush.msra.mxu0 %v332
      %426 = vmatpush.msra.mxu0 %v318
      %427 = vmatpush.msra.mxu0 %v304
      %428 = vmatpush.msra.mxu0 %v229
      %429 = vmatmul.f32.gmra.mxu0 %v404
      %v430 = vpop.f32.mrf.mxu0
      %v431 = vadd.f32 0.0, %v430
      %432 = vmatmul.f32.gmra.mxu0 %v407
      %v433 = vpop.f32.mrf.mxu0
      %v434 = vadd.f32 0.0, %v433
      %435 = vdwg.mxu0
      %436 = vmatpush.msra.mxu0 0.0
      %437 = vmatpush.msra.mxu0 0.0
      %438 = vmatpush.msra.mxu0 0.0
      %439 = vmatpush.msra.mxu0 0.0
      %440 = vmatpush.msra.mxu0 0.0
      %441 = vmatpush.msra.mxu0 0.0
      %442 = vmatpush.msra.mxu0 %v411
      %443 = vmatpush.msra.mxu0 %v397
      %444 = vmatpush.msra.mxu0 %v383
      %445 = vmatpush.msra.mxu0 %v372
      %446 = vmatpush.msra.mxu0 %v358
      %447 = vmatpush.msra.mxu0 %v344
      %448 = vmatpush.msra.mxu0 %v333
      %449 = vmatpush.msra.mxu0 %v319
      %450 = vmatpush.msra.mxu0 %v305
      %451 = vmatpush.msra.mxu0 %v230
      %452 = vmatmul.f32.gmra.mxu0 %v404
      %v453 = vpop.f32.mrf.mxu0
      %v454 = vadd.f32 0.0, %v453
      %455 = vmatmul.f32.gmra.mxu0 %v407
      %v456 = vpop.f32.mrf.mxu0
      %v457 = vadd.f32 0.0, %v456
      %458 = vdwg.mxu0
      %vm459 = vcmp.gt.f32.partialorder %v431, 0.0
      %vm460 = vcmp.gt.f32.partialorder %v454, 0.0
      %vm461 = vcmp.gt.f32.partialorder %v434, 0.0
      %vm462 = vcmp.gt.f32.partialorder %v457, 0.0
      %v463 = vmul.f32 %v431, 0.2
      %v464 = vmul.f32 %v454, 0.2
      %v465 = vmul.f32 %v434, 0.2
      %v466 = vmul.f32 %v457, 0.2
      %v467 = vsel %vm459, %v431, %v463
      %v468 = vsel %vm460, %v454, %v464
      %v469 = vsel %vm461, %v434, %v465
      %v470 = vsel %vm462, %v457, %v466
      %471 = vst.msk [vmem:[#allocation3] sm:$0xff] %vm201, 0.0
      %472 = vst.msk [vmem:[#allocation3 + $0x18] sm:$0xff] %vm201, 0.0
      %473 = vst.msk [vmem:[#allocation3 + $0x10] sm:$0xff] %vm203, 0.0
      %474 = vst.msk [vmem:[#allocation3 + $0x28] sm:$0xff] %vm203, 0.0
      %479 = vrot.lane.b32.xlu0 %v467, 17
      %v480 = vpop.permute.xlu0 %479
      %481 = vrot.lane.b32.xlu0 %v468, 17
      %v482 = vpop.permute.xlu0 %481
      %483 = vrot.lane.b32.xlu0 %v469, 17
      %v484 = vpop.permute.xlu0 %483
      %485 = vrot.lane.b32.xlu0 %v470, 17
      %v486 = vpop.permute.xlu0 %485
      %v487 = vsel %vm201, %v480, %v482
      %v488 = vsel %vm201, %v484, %v486
      %495 = vst.msk [vmem:[#allocation3] sm:$0xff] %vm217, %v480
      %496 = vst [vmem:[#allocation3 + $0x8] sm:$0xff] %v487
      %497 = vst.msk [vmem:[#allocation3 + $0x10] sm:$0xff] %vm201, %v482
      %498 = vst.msk [vmem:[#allocation3 + $0x18] sm:$0xff] %vm217, %v484
      %499 = vst [vmem:[#allocation3 + $0x20] sm:$0xff] %v488
      %500 = vst.msk [vmem:[#allocation3 + $0x28] sm:$0xff] %vm201, %v486
      %v501 = vld [vmem:[#allocation3] sm:$0xff]
      %v502 = vld [vmem:[#allocation3 + $0x8] sm:$0xff]
      %v503 = vld [vmem:[#allocation3 + $0x10] sm:$0xff]
      %v504 = vld [vmem:[#allocation3 + $0x18] sm:$0xff]
      %v505 = vld [vmem:[#allocation3 + $0x20] sm:$0xff]
      %v506 = vld [vmem:[#allocation3 + $0x28] sm:$0xff]
      %v507 = vmul.f32 %v501, %v225
      %v508 = vmul.f32 %v502, %v226
      %v509 = vmul.f32 %v501, %v235
      %v510 = vmul.f32 %v502, %v239
      %v511 = vmul.f32 %v503, %v237
      %v512 = vmul.f32 %v501, %v247
      %v513 = vmul.f32 %v502, %v251
      %v514 = vmul.f32 %v503, %v249
      %v515 = vmul.f32 %v501, %v259
      %v516 = vmul.f32 %v502, %v263
      %v517 = vmul.f32 %v503, %v261
      %v518 = vmul.f32 %v501, %v271
      %v519 = vmul.f32 %v502, %v275
      %v520 = vmul.f32 %v503, %v273
      %v521 = vmul.f32 %v501, %v283
      %v522 = vmul.f32 %v502, %v287
      %v523 = vmul.f32 %v503, %v285
      %v524 = vmul.f32 %v504, %v225
      %v525 = vmul.f32 %v505, %v226
      %v526 = vmul.f32 %v504, %v235
      %v527 = vmul.f32 %v505, %v239
      %v528 = vmul.f32 %v506, %v237
      %v529 = vmul.f32 %v504, %v247
      %v530 = vmul.f32 %v505, %v251
      %v531 = vmul.f32 %v506, %v249
      %v532 = vmul.f32 %v504, %v259
      %v533 = vmul.f32 %v505, %v263
      %v534 = vmul.f32 %v506, %v261
      %v535 = vmul.f32 %v504, %v271
      %v536 = vmul.f32 %v505, %v275
      %v537 = vmul.f32 %v506, %v273
      %v538 = vmul.f32 %v504, %v283
      %v539 = vmul.f32 %v505, %v287
      %v540 = vmul.f32 %v506, %v285
      %544 = vrot.lane.b32.xlu0 %v501, 127
      %v545 = vpop.permute.xlu0 %544
      %546 = vrot.lane.b32.xlu0 %v502, 127
      %v547 = vpop.permute.xlu0 %546
      %548 = vrot.lane.b32.xlu0 %v503, 127
      %v549 = vpop.permute.xlu0 %548
      %v550 = vsel %vm303, %v545, %v547
      %v551 = vsel %vm303, %v547, %v549
      %557 = vrot.lane.b32.xlu0 %v509, 126
      %v558 = vpop.permute.xlu0 %557
      %559 = vrot.lane.b32.xlu0 %v510, 126
      %v560 = vpop.permute.xlu0 %559
      %561 = vrot.lane.b32.xlu0 %v511, 126
      %v562 = vpop.permute.xlu0 %561
      %v563 = vsel %vm317, %v558, %v560
      %v564 = vsel %vm317, %v560, %v562
      %570 = vrot.lane.b32.xlu0 %v512, 112
      %v571 = vpop.permute.xlu0 %570
      %572 = vrot.lane.b32.xlu0 %v513, 112
      %v573 = vpop.permute.xlu0 %572
      %574 = vrot.lane.b32.xlu0 %v514, 112
      %v575 = vpop.permute.xlu0 %574
      %v576 = vsel %vm331, %v571, %v573
      %v577 = vsel %vm331, %v573, %v575
      %580 = vrot.lane.b32.xlu0 %v501, 111
      %v581 = vpop.permute.xlu0 %580
      %582 = vrot.lane.b32.xlu0 %v502, 111
      %v583 = vpop.permute.xlu0 %582
      %584 = vrot.lane.b32.xlu0 %v503, 111
      %v585 = vpop.permute.xlu0 %584
      %v586 = vsel %vm342, %v581, %v583
      %v587 = vsel %vm342, %v583, %v585
      %593 = vrot.lane.b32.xlu0 %v515, 110
      %v594 = vpop.permute.xlu0 %593
      %595 = vrot.lane.b32.xlu0 %v516, 110
      %v596 = vpop.permute.xlu0 %595
      %597 = vrot.lane.b32.xlu0 %v517, 110
      %v598 = vpop.permute.xlu0 %597
      %v599 = vsel %vm356, %v594, %v596
      %v600 = vsel %vm356, %v596, %v598
      %606 = vrot.lane.b32.xlu0 %v518, 96
      %v607 = vpop.permute.xlu0 %606
      %608 = vrot.lane.b32.xlu0 %v519, 96
      %v609 = vpop.permute.xlu0 %608
      %610 = vrot.lane.b32.xlu0 %v520, 96
      %v611 = vpop.permute.xlu0 %610
      %v612 = vsel %vm370, %v607, %v609
      %v613 = vsel %vm370, %v609, %v611
      %616 = vrot.lane.b32.xlu0 %v501, 95
      %v617 = vpop.permute.xlu0 %616
      %618 = vrot.lane.b32.xlu0 %v502, 95
      %v619 = vpop.permute.xlu0 %618
      %620 = vrot.lane.b32.xlu0 %v503, 95
      %v621 = vpop.permute.xlu0 %620
      %v622 = vsel %vm381, %v617, %v619
      %v623 = vsel %vm381, %v619, %v621
      %629 = vrot.lane.b32.xlu0 %v521, 94
      %v630 = vpop.permute.xlu0 %629
      %631 = vrot.lane.b32.xlu0 %v522, 94
      %v632 = vpop.permute.xlu0 %631
      %633 = vrot.lane.b32.xlu0 %v523, 94
      %v634 = vpop.permute.xlu0 %633
      %v635 = vsel %vm395, %v630, %v632
      %v636 = vsel %vm395, %v632, %v634
      %642 = vrot.lane.b32.xlu0 %v504, 127
      %v643 = vpop.permute.xlu0 %642
      %644 = vrot.lane.b32.xlu0 %v505, 127
      %v645 = vpop.permute.xlu0 %644
      %646 = vrot.lane.b32.xlu0 %v506, 127
      %v647 = vpop.permute.xlu0 %646
      %v648 = vsel %vm303, %v643, %v645
      %v649 = vsel %vm303, %v645, %v647
      %655 = vrot.lane.b32.xlu0 %v526, 126
      %v656 = vpop.permute.xlu0 %655
      %657 = vrot.lane.b32.xlu0 %v527, 126
      %v658 = vpop.permute.xlu0 %657
      %659 = vrot.lane.b32.xlu0 %v528, 126
      %v660 = vpop.permute.xlu0 %659
      %v661 = vsel %vm317, %v656, %v658
      %v662 = vsel %vm317, %v658, %v660
      %668 = vrot.lane.b32.xlu0 %v529, 112
      %v669 = vpop.permute.xlu0 %668
      %670 = vrot.lane.b32.xlu0 %v530, 112
      %v671 = vpop.permute.xlu0 %670
      %672 = vrot.lane.b32.xlu0 %v531, 112
      %v673 = vpop.permute.xlu0 %672
      %v674 = vsel %vm331, %v669, %v671
      %v675 = vsel %vm331, %v671, %v673
      %678 = vrot.lane.b32.xlu0 %v504, 111
      %v679 = vpop.permute.xlu0 %678
      %680 = vrot.lane.b32.xlu0 %v505, 111
      %v681 = vpop.permute.xlu0 %680
      %682 = vrot.lane.b32.xlu0 %v506, 111
      %v683 = vpop.permute.xlu0 %682
      %v684 = vsel %vm342, %v679, %v681
      %v685 = vsel %vm342, %v681, %v683
      %691 = vrot.lane.b32.xlu0 %v532, 110
      %v692 = vpop.permute.xlu0 %691
      %693 = vrot.lane.b32.xlu0 %v533, 110
      %v694 = vpop.permute.xlu0 %693
      %695 = vrot.lane.b32.xlu0 %v534, 110
      %v696 = vpop.permute.xlu0 %695
      %v697 = vsel %vm356, %v692, %v694
      %v698 = vsel %vm356, %v694, %v696
      %704 = vrot.lane.b32.xlu0 %v535, 96
      %v705 = vpop.permute.xlu0 %704
      %706 = vrot.lane.b32.xlu0 %v536, 96
      %v707 = vpop.permute.xlu0 %706
      %708 = vrot.lane.b32.xlu0 %v537, 96
      %v709 = vpop.permute.xlu0 %708
      %v710 = vsel %vm370, %v705, %v707
      %v711 = vsel %vm370, %v707, %v709
      %717 = vrot.lane.b32.xlu0 %v538, 127
      %v718 = vpop.permute.xlu0 %717
      %719 = vrot.lane.b32.xlu0 %v539, 127
      %v720 = vpop.permute.xlu0 %719
      %721 = vrot.lane.b32.xlu0 %v540, 127
      %v722 = vpop.permute.xlu0 %721
      %v723 = vsel %vm303, %v718, %v720
      %v724 = vsel %vm303, %v720, %v722
      %725 = vrot.lane.b32.xlu0 %v504, 95
      %v726 = vpop.permute.xlu0 %725
      %727 = vrot.lane.b32.xlu0 %v505, 95
      %v728 = vpop.permute.xlu0 %727
      %729 = vrot.lane.b32.xlu0 %v506, 95
      %v730 = vpop.permute.xlu0 %729
      %731 = vrot.lane.b32.xlu0 %v723, 95
      %v732 = vpop.permute.xlu0 %731
      %733 = vrot.lane.b32.xlu0 %v724, 95
      %v734 = vpop.permute.xlu0 %733
      %735 = vrot.lane.b32.xlu0 %v722, 95
      %v736 = vpop.permute.xlu0 %735
      %737 = vrot.lane.b32.xlu0 1.0, 95
      %v738 = vpop.permute.xlu0 %737
      %v739 = vsel %vm381, %v726, %v728
      %v740 = vsel %vm381, %v728, %v730
      %v741 = vsel %vm381, %v732, %v734
      %v742 = vsel %vm381, %v734, %v736
      %v747 = vld [vmem:[%s3] sm:$0xff]
      %v748 = vld [vmem:[%s3 + $0x8] sm:$0xff]
      %v749 = vld [vmem:[%s3 + $0x10] sm:$0xff]
      %v750 = vld [vmem:[%s3 + $0x18] sm:$0xff]
      %v752 = vsel %vm201, %v748, 0
      %v755 = vsel %vm201, %v750, 0
      %v757 = vsel %vm409, %v738, 0
      %759 = vmatpush.msra.mxu0 %v710
      %760 = vmatpush.msra.mxu0 %v697
      %761 = vmatpush.msra.mxu0 %v684
      %762 = vmatpush.msra.mxu0 %v674
      %763 = vmatpush.msra.mxu0 %v661
      %764 = vmatpush.msra.mxu0 %v648
      %765 = vmatpush.msra.mxu0 %v524
      %766 = vmatpush.msra.mxu0 %v635
      %767 = vmatpush.msra.mxu0 %v622
      %768 = vmatpush.msra.mxu0 %v612
      %769 = vmatpush.msra.mxu0 %v599
      %770 = vmatpush.msra.mxu0 %v586
      %771 = vmatpush.msra.mxu0 %v576
      %772 = vmatpush.msra.mxu0 %v563
      %773 = vmatpush.msra.mxu0 %v550
      %774 = vmatpush.msra.mxu0 %v507
      %775 = vmatmul.f32.gmra.mxu0 %v747
      %v776 = vpop.f32.mrf.mxu0
      %v777 = vadd.f32 0.0, %v776
      %778 = vmatmul.f32.gmra.mxu0 %v749
      %v779 = vpop.f32.mrf.mxu0
      %v780 = vadd.f32 0.0, %v779
      %781 = vdwg.mxu0
      %782 = vmatpush.msra.mxu0 0.0
      %783 = vmatpush.msra.mxu0 0.0
      %784 = vmatpush.msra.mxu0 0.0
      %785 = vmatpush.msra.mxu0 0.0
      %786 = vmatpush.msra.mxu0 0.0
      %787 = vmatpush.msra.mxu0 0.0
      %788 = vmatpush.msra.mxu0 0.0
      %789 = vmatpush.msra.mxu0 0.0
      %790 = vmatpush.msra.mxu0 0.0
      %791 = vmatpush.msra.mxu0 0.0
      %792 = vmatpush.msra.mxu0 0.0
      %793 = vmatpush.msra.mxu0 0.0
      %794 = vmatpush.msra.mxu0 0.0
      %795 = vmatpush.msra.mxu0 %v757
      %796 = vmatpush.msra.mxu0 %v741
      %797 = vmatpush.msra.mxu0 %v739
      %798 = vmatmul.f32.gmra.mxu0 %v752
      %v799 = vpop.f32.mrf.mxu0
      %v800 = vadd.f32 %v777, %v799
      %801 = vmatmul.f32.gmra.mxu0 %v755
      %v802 = vpop.f32.mrf.mxu0
      %v803 = vadd.f32 %v780, %v802
      %804 = vdwg.mxu0
      %805 = vmatpush.msra.mxu0 %v711
      %806 = vmatpush.msra.mxu0 %v698
      %807 = vmatpush.msra.mxu0 %v685
      %808 = vmatpush.msra.mxu0 %v675
      %809 = vmatpush.msra.mxu0 %v662
      %810 = vmatpush.msra.mxu0 %v649
      %811 = vmatpush.msra.mxu0 %v525
      %812 = vmatpush.msra.mxu0 %v636
      %813 = vmatpush.msra.mxu0 %v623
      %814 = vmatpush.msra.mxu0 %v613
      %815 = vmatpush.msra.mxu0 %v600
      %816 = vmatpush.msra.mxu0 %v587
      %817 = vmatpush.msra.mxu0 %v577
      %818 = vmatpush.msra.mxu0 %v564
      %819 = vmatpush.msra.mxu0 %v551
      %820 = vmatpush.msra.mxu0 %v508
      %821 = vmatmul.f32.gmra.mxu0 %v747
      %v822 = vpop.f32.mrf.mxu0
      %v823 = vadd.f32 0.0, %v822
      %824 = vmatmul.f32.gmra.mxu0 %v749
      %v825 = vpop.f32.mrf.mxu0
      %v826 = vadd.f32 0.0, %v825
      %827 = vdwg.mxu0
      %828 = vmatpush.msra.mxu0 0.0
      %829 = vmatpush.msra.mxu0 0.0
      %830 = vmatpush.msra.mxu0 0.0
      %831 = vmatpush.msra.mxu0 0.0
      %832 = vmatpush.msra.mxu0 0.0
      %833 = vmatpush.msra.mxu0 0.0
      %834 = vmatpush.msra.mxu0 0.0
      %835 = vmatpush.msra.mxu0 0.0
      %836 = vmatpush.msra.mxu0 0.0
      %837 = vmatpush.msra.mxu0 0.0
      %838 = vmatpush.msra.mxu0 0.0
      %839 = vmatpush.msra.mxu0 0.0
      %840 = vmatpush.msra.mxu0 0.0
      %841 = vmatpush.msra.mxu0 %v757
      %842 = vmatpush.msra.mxu0 %v742
      %843 = vmatpush.msra.mxu0 %v740
      %844 = vmatmul.f32.gmra.mxu0 %v752
      %v845 = vpop.f32.mrf.mxu0
      %v846 = vadd.f32 %v823, %v845
      %847 = vmatmul.f32.gmra.mxu0 %v755
      %v848 = vpop.f32.mrf.mxu0
      %v849 = vadd.f32 %v826, %v848
      %850 = vdwg.mxu0
      %v851 = vld [vmem:[%s192] sm:$0xff]
      %v852 = vld [vmem:[%s192 + $0x8] sm:$0xff]
      %v853 = vadd.f32 %v800, 1.0
      %v854 = vadd.f32 %v846, 1.0
      %v855 = vmul.f32 %v851, %v853
      %v856 = vmul.f32 %v852, %v854
      %v857 = vadd.f32 %v855, %v803
      %v858 = vadd.f32 %v856, %v849
      %859 = vst [vmem:[%s197] sm:$0xff] %v857
      %860 = vst [vmem:[%s197 + $0x8] sm:$0xff] %v858
      %p861 = scmp.lt.s32.totalorder %s15, 1
      %s862 = scalar_select %p861, %s15, 1
      %s863 = smul.addr %s862, 2
      %s864 = smul.addr %s863, 8
      %s865 = scalar_lea.vmem %s4, %s864
      // Predicated region
      $region37: #{self_ft_layer.1} parent=35 // pred_check
        %p866 = pneg %p122
      $region38: #{self_ft_layer.1} parent=35 // pred_check_branch
        %868 = sbr.rel (%p866) target = $region40
      $region39: #{self_ft_layer.1} parent=35 // pred_region
        _
      $region40: #{self_ft_layer.1} parent=35 // pred_fallthru
        _
    $region36: #{self_ft_layer.1} parent=5 // pred_fallthru
      _
    %p869 = scmp.le.s32.totalorder 2, %s10
    // Predicated region
    $region41: #{self_ft_layer.1} parent=5 // pred_check
      %p870 = pneg %p869
    $region42: #{self_ft_layer.1} parent=5 // pred_check_branch
      %872 = sbr.rel (%p870) target = $region44
    $region43: #{self_ft_layer.1} parent=5 // pred_region
      %s873 = ssub.s32 %s10, 2
      // Predicated region
      $region45: #{self_ft_layer.1} parent=43 // pred_check
        %p874 = pneg %p128
      $region46: #{self_ft_layer.1} parent=43 // pred_check_branch
        %876 = sbr.rel (%p874) target = $region48
      $region47: #{self_ft_layer.1} parent=43 // pred_region
        %p877 = scmp.lt.s32.totalorder %s16, 1
        %s878 = scalar_select %p877, %s16, 1
        %s879 = smul.addr %s878, 2
        %s880 = smul.addr %s879, 8
        %s881 = scalar_lea.vmem %s4, %s880
      $region48: #{self_ft_layer.1} parent=43 // pred_fallthru
        _
    $region44: #{self_ft_layer.1} parent=5 // pred_fallthru
      _
  $region6: #{self_ft_layer.1} parent=0 // loop_footer
    %s14 = sadd.s32 1, %s10
  $region7: #{self_ft_layer.1} parent=0 // loop_footer_branch
    %9 = sbr.rel target = $region3
  $region8: #{self_ft_layer.1} parent=0 // loop_exit
    _

</llo_original>
